<compile_context>
chip_gen: v7x
topology: tpu7x:2x2x1
jax: 0.10.0
libtpu: 0.0.40
codegen_flags: <defaults>
</compile_context>

<pallas_src>
import jax
import jax.numpy as jnp
from jax.experimental import pallas as pl
from jax.experimental.pallas import tpu as pltpu


# ----------------------------------------------------------------------------
# Small helpers
# ----------------------------------------------------------------------------
def _cdiv(a: int, b: int) -> int:
    return -(-a // b)


def _round_up(v: int, m: int) -> int:
    return _cdiv(v, m) * m


def _sublane(dtype) -> int:
    # Minimum second-to-last (sublane) tile multiple for a dtype:
    # f32 -> 8, bf16 -> 16, int8/fp8 -> 32.
    return max(8, 32 // jnp.dtype(dtype).itemsize)


def _fit_tile(dim: int, tile_max: int, align: int) -> int:
    """Problem-adaptive tile: split `dim` into ceil(dim/tile_max) blocks and
    align the per-block size, so padding waste stays small (e.g. M=300,
    tile_max=512 -> tile 304, not 512)."""
    dim = max(int(dim), 1)
    n_blocks = _cdiv(dim, tile_max)
    return _round_up(_cdiv(dim, n_blocks), align)


def _vmem_limit_bytes() -> int:
    """Generation-aware scoped-VMEM request: leave ~25% headroom for compiler
    scratch.  v7x (64 MiB physical) -> 48 MiB; v5e/v6e (128 MiB) -> 96 MiB."""
    cap = 128 * 1024 * 1024
    try:
        cap = int(pltpu.get_tpu_info().vmem_capacity_bytes)
    except Exception:
        pass
    return min(int(cap * 3 // 4), 100 * 1024 * 1024)


# ----------------------------------------------------------------------------
# Kernels
# ----------------------------------------------------------------------------
def _linear_kernel_f32_out(x_ref, w_ref, b_ref, o_ref):
    """float32 output: accumulate directly into the resident output block.
    x_ref: (tm, tk), w_ref: (tk, tn), b_ref: (1, tn) f32, o_ref: (tm, tn) f32.
    The output block index_map ignores k, so o_ref stays in VMEM across the
    whole K reduction (K is the innermost grid axis)."""
    k = pl.program_id(2)

    @pl.when(k == 0)
    def _():
        # Fold the bias into the accumulator init (no finalize pass needed).
        o_ref[...] = jnp.broadcast_to(b_ref[...], o_ref.shape)

    o_ref[...] += jnp.dot(
        x_ref[...], w_ref[...], preferred_element_type=jnp.float32
    )


def _linear_kernel_acc(x_ref, w_ref, b_ref, o_ref, acc_ref):
    """Generic output dtype: f32 VMEM accumulator, single cast at the end."""
    k = pl.program_id(2)

    @pl.when(k == 0)
    def _():
        acc_ref[...] = jnp.broadcast_to(b_ref[...], acc_ref.shape)

    acc_ref[...] += jnp.dot(
        x_ref[...], w_ref[...], preferred_element_type=jnp.float32
    )

    @pl.when(k == pl.num_programs(2) - 1)
    def _():
        o_ref[...] = acc_ref[...].astype(o_ref.dtype)


# ----------------------------------------------------------------------------
# Wrapper: prepare (once per weight) / apply (per call)
# ----------------------------------------------------------------------------
def prepare_linear(weight, bias, *, tn_max=1024, tk_max=512, compute_dtype=None,
                   split_n_for_megacore=True):
    """One-time prep of the weight/bias (weight-stationary layout).

    weight: (N, K) PyTorch layout (out_features, in_features)
    bias:   (N,)
    Returns a dict usable by `linear_apply` any number of times.
    """
    N, K = weight.shape
    w_dtype = compute_dtype if compute_dtype is not None else weight.dtype

    tn = _fit_tile(N, tn_max, 128)   # lane-aligned
    tk = _fit_tile(K, tk_max, 128)
    Np = _round_up(N, tn)
    Kp = _round_up(K, tk)

    # Keep both "parallel" grid axes non-degenerate when it costs nothing:
    # with small M the i axis may be a single tile, so give the N axis >= 2
    # blocks so both v7x TensorCores get work.
    if split_n_for_megacore and Np // tn == 1 and tn % 256 == 0:
        tn //= 2

    # Transpose ONCE to (K, N) so the MXU contracts on K with no per-tile XLU
    # transpose, and zero-pad ONCE (padded K rows contribute exactly 0).
    w_kn = jnp.pad(weight.astype(w_dtype).T, ((0, Kp - K), (0, Np - N)))
    b_f32 = jnp.pad(bias.astype(jnp.float32).reshape(1, N),
                    ((0, 0), (0, Np - N)))

    return dict(w=w_kn, b=b_f32, N=N, K=K, Np=Np, Kp=Kp, tn=tn, tk=tk)


def linear_apply(x, params, *, tm_max=512):
    """y = x @ W.T + b using the prepared params. x: (M, K) -> (M, N)."""
    M, K = x.shape
    assert K == params["K"], "in_features mismatch"
    w, b = params["w"], params["b"]
    N, Np, Kp = params["N"], params["Np"], params["Kp"]
    tn, tk = params["tn"], params["tk"]
    out_dtype = x.dtype

    # Per-call tile / pad for x only (dtype-aware sublane alignment).
    tm = _fit_tile(M, tm_max, _sublane(x.dtype))
    Mp = _round_up(M, tm)
    if (Mp, Kp) != (M, K):
        x_p = jnp.pad(x, ((0, Mp - M), (0, Kp - K)))
    else:
        x_p = x

    grid = (Mp // tm, Np // tn, Kp // tk)

    use_direct = out_dtype == jnp.float32
    kernel = _linear_kernel_f32_out if use_direct else _linear_kernel_acc
    scratch = [] if use_direct else [pltpu.VMEM((tm, tn), jnp.float32)]

    cost = pl.CostEstimate(
        flops=2 * M * N * K,
        transcendentals=0,
        bytes_accessed=(
            M * K * jnp.dtype(x.dtype).itemsize
            + K * N * jnp.dtype(w.dtype).itemsize
            + N * 4
            + M * N * jnp.dtype(out_dtype).itemsize
        ),
    )

    out_p = pl.pallas_call(
        kernel,
        out_shape=jax.ShapeDtypeStruct((Mp, Np), out_dtype),
        grid_spec=pltpu.PrefetchScalarGridSpec(
            num_scalar_prefetch=0,
            grid=grid,
            in_specs=[
                pl.BlockSpec((tm, tk), lambda i, j, k: (i, k)),   # x tile
                pl.BlockSpec((tk, tn), lambda i, j, k: (k, j)),   # W (K,N) tile
                pl.BlockSpec((1, tn), lambda i, j, k: (0, j)),    # bias (N-resident)
            ],
            out_specs=pl.BlockSpec((tm, tn), lambda i, j, k: (i, j)),
            scratch_shapes=scratch,
        ),
        compiler_params=pltpu.CompilerParams(
            dimension_semantics=("parallel", "parallel", "arbitrary"),
            vmem_limit_bytes=_vmem_limit_bytes(),
        ),
        cost_estimate=cost,
    )(x_p, w, b)

    return out_p[:M, :N]


def simple_linear(x, weight, bias):
    """Convenience one-shot entry point (prepares weights on every call)."""
    return linear_apply(x, prepare_linear(weight, bias))


# ----------------------------------------------------------------------------
# Demo / correctness checks
# ----------------------------------------------------------------------------
if __name__ == "__main__":
    # Module spec: SimpleLinear(in_features=10, out_features=5), x of shape (3, 10)
    in_features, out_features, batch = 10, 5, 3

    key = jax.random.PRNGKey(0)
    kx, kw = jax.random.split(key)
    x = jax.random.normal(kx, (batch, in_features), dtype=jnp.float32)
    weight = jax.random.normal(kw, (out_features, in_features), dtype=jnp.float32)
    bias = jnp.zeros((out_features,), dtype=jnp.float32)

    # Weight transposed + padded ONCE; per-call work is only a tiny x pad.
    params = prepare_linear(weight, bias)
    out = linear_apply(x, params)
    jax.block_until_ready(out)

    ref = x @ weight.T + bias
    assert out.shape == (batch, out_features)
    assert jnp.allclose(out, ref, atol=1e-5, rtol=1e-5)

    # Larger multi-tile problem: exercises the K reduction, bias-at-init and a
    # >=2-block parallel N axis (both v7x TensorCores busy).  grid = (1, 2, 2).
    M2, K2, N2 = 384, 1024, 512
    kx2, kw2, kb2 = jax.random.split(jax.random.PRNGKey(1), 3)
    x2 = jax.random.normal(kx2, (M2, K2), dtype=jnp.float32)
    w2 = jax.random.normal(kw2, (N2, K2), dtype=jnp.float32)
    b2 = jax.random.normal(kb2, (N2,), dtype=jnp.float32)
    p2 = prepare_linear(w2, b2)
    out2 = linear_apply(x2, p2)
    jax.block_until_ready(out2)
    ref2 = x2 @ w2.T + b2
    assert jnp.allclose(out2, ref2, atol=1e-3, rtol=1e-3)

    # bf16 inputs (halved HBM bytes, fast MXU path): exercises the f32-scratch
    # accumulator kernel since out_dtype != float32.
    x3 = x2.astype(jnp.bfloat16)
    p3 = prepare_linear(w2, b2, compute_dtype=jnp.bfloat16)
    out3 = linear_apply(x3, p3)
    jax.block_until_ready(out3)
    ref3 = (x3.astype(jnp.float32) @ w2.astype(jnp.bfloat16).astype(jnp.float32).T
            + b2).astype(jnp.bfloat16)
    assert jnp.allclose(out3.astype(jnp.float32), ref3.astype(jnp.float32),
                        atol=0.5, rtol=2e-2)

    print("KERNEL_OK")
</pallas_src>

<mosaic_0001>
module attributes {stable_mosaic.version = 11 : i64} {
  func.func @_linear_kernel_f32_out(%arg0: i32, %arg1: i32, %arg2: i32, %arg3: memref<8x128xf32, #tpu.memory_space<vmem>>, %arg4: memref<128x128xf32, #tpu.memory_space<vmem>>, %arg5: memref<1x128xf32, #tpu.memory_space<vmem>>, %arg6: memref<8x128xf32, #tpu.memory_space<vmem>>) attributes {dimension_semantics = [#tpu.dimension_semantics<parallel>, #tpu.dimension_semantics<parallel>, #tpu.dimension_semantics<arbitrary>], iteration_bounds = array<i64: 1, 1, 1>, scalar_prefetch = 0 : i64, scratch_operands = 0 : i64, tpu.core_type = #tpu.core_type<tc>, window_params = [{transform_indices = @transform_0, window_bounds = array<i64: 8, 128>}, {transform_indices = @transform_1, window_bounds = array<i64: 128, 128>}, {transform_indices = @transform_2, window_bounds = array<i64: 1, 128>}, {transform_indices = @transform_3, window_bounds = array<i64: 8, 128>}]} {
    %c0_i32 = arith.constant 0 : i32
    %0 = arith.cmpi eq, %arg2, %c0_i32 : i32
    %1 = arith.extui %0 : i1 to i32
    %c0_i32_0 = arith.constant 0 : i32
    %2 = arith.cmpi ne, %1, %c0_i32_0 : i32
    scf.if %2 {
      %c0_8 = arith.constant 0 : index
      %c0_9 = arith.constant 0 : index
      %9 = vector.load %arg5[%c0_8, %c0_9] : memref<1x128xf32, #tpu.memory_space<vmem>>, vector<1x128xf32>
      %10 = vector.shape_cast %9 : vector<1x128xf32> to vector<1x128xf32>
      %11 = vector.broadcast %10 : vector<1x128xf32> to vector<8x128xf32>
      %c0_10 = arith.constant 0 : index
      %c0_11 = arith.constant 0 : index
      %12 = vector.load %arg6[%c0_10, %c0_11] : memref<8x128xf32, #tpu.memory_space<vmem>>, vector<8x128xf32>
      tpu.vector_store %arg6[%c0_10, %c0_11], %11 {strides = array<i32>} : memref<8x128xf32, #tpu.memory_space<vmem>>, vector<8x128xf32>,
    } else {
    }
    %c0 = arith.constant 0 : index
    %c0_1 = arith.constant 0 : index
    %3 = vector.load %arg6[%c0, %c0_1] : memref<8x128xf32, #tpu.memory_space<vmem>>, vector<8x128xf32>
    %c0_2 = arith.constant 0 : index
    %c0_3 = arith.constant 0 : index
    %4 = vector.load %arg3[%c0_2, %c0_3] : memref<8x128xf32, #tpu.memory_space<vmem>>, vector<8x128xf32>
    %c0_4 = arith.constant 0 : index
    %c0_5 = arith.constant 0 : index
    %5 = vector.load %arg4[%c0_4, %c0_5] : memref<128x128xf32, #tpu.memory_space<vmem>>, vector<128x128xf32>
    %cst = arith.constant dense<0.000000e+00> : vector<8x128xf32>
    %6 = tpu.matmul %4, %5, %cst {dimension_numbers = #tpu.dot_dimension_numbers<[1], [0], [0], [1], [0, 0, 1, 1], [], []>} : vector<8x128xf32>, vector<128x128xf32>, vector<8x128xf32> -> vector<8x128xf32>
    %7 = arith.addf %3, %6 : vector<8x128xf32>
    %c0_6 = arith.constant 0 : index
    %c0_7 = arith.constant 0 : index
    %8 = vector.load %arg6[%c0_6, %c0_7] : memref<8x128xf32, #tpu.memory_space<vmem>>, vector<8x128xf32>
    tpu.vector_store %arg6[%c0_6, %c0_7], %7 {strides = array<i32>} : memref<8x128xf32, #tpu.memory_space<vmem>>, vector<8x128xf32>,
    return
  }
  func.func @transform_0(%arg0: i32, %arg1: i32, %arg2: i32) -> (i32, i32) {
    %c0_i32 = arith.constant 0 : i32
    return %arg0, %arg2 : i32, i32
  }
  func.func @transform_1(%arg0: i32, %arg1: i32, %arg2: i32) -> (i32, i32) {
    %c0_i32 = arith.constant 0 : i32
    return %arg2, %arg1 : i32, i32
  }
  func.func @transform_2(%arg0: i32, %arg1: i32, %arg2: i32) -> (i32, i32) {
    %c0_i32 = arith.constant 0 : i32
    %c0_i32_0 = arith.constant 0 : i32
    return %c0_i32, %arg1 : i32, i32
  }
  func.func @transform_3(%arg0: i32, %arg1: i32, %arg2: i32) -> (i32, i32) {
    %c0_i32 = arith.constant 0 : i32
    return %arg0, %arg1 : i32, i32
  }
}

</mosaic_0001>

<llo_original>
// kernel: tpu_custom_call.1
$region0: #{tpu_custom_call.1}
  #allocation0 [shape = 'u32[]', space=smem, size = 0x4, offset = 0x4, fixed_abs, tag = 'smem constant byte address 0x4 - core index']
  #allocation1 [shape = 'u32[144,128]{1,0:T(1,128)}', space=vmem, size = 0x12000, scoped, tag = 'internal scratch']
  %s0 = inlined_call_operand.hbm [shape: f32[8,128], index: 0, kind: input, shape index: {}]
  %s1 = inlined_call_operand.hbm [shape: f32[128,128], index: 1, kind: input, shape index: {}]
  %s2 = inlined_call_operand.hbm [shape: f32[1,128], index: 2, kind: input, shape index: {}]
  %s3 = inlined_call_operand.hbm [shape: f32[8,128], index: 3, kind: output, shape index: {}]
  %s4 = sld [smem:[#allocation0]]
  $region38: #{tpu_custom_call.1} parent=0
    _
  %s6 = ssub.s32 1, %s4
  %s7 = scalar_select 0, %s6, %s4
  $region1: #{tpu_custom_call.1} parent=0
    #allocation2 [shape = 'u8[4096]{0}', space=vmem, size = 0x1000, scoped, tag = 'input window, operand 0, single buffered']
    #allocation3 [shape = 's32[1]{0}', space=sflag, size = 0x4, scoped, tag = 'scoped memory for tpu_custom_call.1']
    #allocation4 [shape = 's32[1]{0}', space=sflag, size = 0x4, scoped, tag = 'scoped memory for tpu_custom_call.1']
    #allocation5 [shape = 'u8[65536]{0}', space=vmem, size = 0x10000, scoped, tag = 'input window, operand 1, single buffered']
    #allocation6 [shape = 's32[1]{0}', space=sflag, size = 0x4, scoped, tag = 'scoped memory for tpu_custom_call.1']
    #allocation7 [shape = 'u8[512]{0}', space=vmem, size = 0x400, scoped, tag = 'input window, operand 2, single buffered']
    #allocation8 [shape = 'u8[4096]{0}', space=vmem, size = 0x1000, scoped, tag = 'output window, operand 0, single buffered']
    %8 = vsyncpa [#allocation3], 0
    %9 = vsyncpa [#allocation6], 0
    %10 = vsyncpa [#allocation4], 0
    // Predicated region
    $region2: #{tpu_custom_call.1} parent=1 // pred_check
      _
    $region3: #{tpu_custom_call.1} parent=1 // pred_check_branch
      %12 = sbr.rel (0) target = $region5
    $region4: #{tpu_custom_call.1} parent=1 // pred_region
      %s14 = ssub.s32 128, 128
      %15 = vsyncadd [#allocation3], %s14
      %s17 = sshll.u32 [#allocation2], 4
      %s18 = int_to_ptr.vmem [resolvable:$true] %s17
      %20 = dma.hbm_to_vmem [thread:$0]  %s0, 128, %s18, [#allocation3]
    $region5: #{tpu_custom_call.1} parent=1 // pred_fallthru
      _
    // Predicated region
    $region6: #{tpu_custom_call.1} parent=1 // pred_check
      _
    $region7: #{tpu_custom_call.1} parent=1 // pred_check_branch
      %22 = sbr.rel (0) target = $region9
    $region8: #{tpu_custom_call.1} parent=1 // pred_region
      %s24 = ssub.s32 2048, 2048
      %25 = vsyncadd [#allocation6], %s24
      %s26 = sshll.u32 [#allocation5], 4
      %s27 = int_to_ptr.vmem [resolvable:$true] %s26
      %32 = dma.hbm_to_vmem [thread:$0]  %s1, 2048, %s27, [#allocation6], 128, 128, 8
    $region9: #{tpu_custom_call.1} parent=1 // pred_fallthru
      _
    // Predicated region
    $region10: #{tpu_custom_call.1} parent=1 // pred_check
      _
    $region11: #{tpu_custom_call.1} parent=1 // pred_check_branch
      %34 = sbr.rel (0) target = $region13
    $region12: #{tpu_custom_call.1} parent=1 // pred_region
      %s36 = ssub.s32 16, 16
      %37 = vsyncadd [#allocation6], %s36
      %s39 = sshll.u32 [#allocation7], 4
      %s40 = int_to_ptr.vmem [resolvable:$true] %s39
      %42 = dma.hbm_to_vmem [thread:$0]  %s2, 16, %s40, [#allocation6]
    $region13: #{tpu_custom_call.1} parent=1 // pred_fallthru
      _
    // Predicated region
    $region14: #{tpu_custom_call.1} parent=1 // pred_check
      _
    $region15: #{tpu_custom_call.1} parent=1 // pred_check_branch
      %44 = sbr.rel (0) target = $region17
    $region16: #{tpu_custom_call.1} parent=1 // pred_region
      %45 = dma.done [#allocation3], 128
    $region17: #{tpu_custom_call.1} parent=1 // pred_fallthru
      _
    // Predicated region
    $region18: #{tpu_custom_call.1} parent=1 // pred_check
      _
    $region19: #{tpu_custom_call.1} parent=1 // pred_check_branch
      %47 = sbr.rel (0) target = $region21
    $region20: #{tpu_custom_call.1} parent=1 // pred_region
      %48 = dma.done [#allocation6], 2048
    $region21: #{tpu_custom_call.1} parent=1 // pred_fallthru
      _
    // Predicated region
    $region22: #{tpu_custom_call.1} parent=1 // pred_check
      _
    $region23: #{tpu_custom_call.1} parent=1 // pred_check_branch
      %50 = sbr.rel (0) target = $region25
    $region24: #{tpu_custom_call.1} parent=1 // pred_region
      %51 = dma.done [#allocation6], 16
    $region25: #{tpu_custom_call.1} parent=1 // pred_fallthru
      _
    %p52 = scmp.eq.s32.totalorder 0, 0
    // Predicated region
    $region26: #{tpu_custom_call.1} parent=1 // pred_check
      %p53 = pneg %p52
    $region27: #{tpu_custom_call.1} parent=1 // pred_check_branch
      %55 = sbr.rel (%p53) target = $region29
    $region28: #{tpu_custom_call.1} parent=1 // pred_region
      %v56 = vld [vmem:[#allocation7] sm:$0x1]
      %v58 = vlaneseq
      %v59 = vshrl.u32 %v58, 7
      %v60 = vsub.s32 0, %v59
      %v61 = vrot.slane %v56, %v60
      %63 = vst [vmem:[#allocation8] sm:$0xff] %v61
    $region29: #{tpu_custom_call.1} parent=1 // pred_fallthru
      _
    %v64 = vld [vmem:[#allocation8] sm:$0xff]
    %v65 = vld [vmem:[#allocation2] sm:$0xff]
    %v66 = vld [vmem:[#allocation5] sm:$0xff]
    %v67 = vld [vmem:[#allocation5 + $0x8] sm:$0xff]
    %v68 = vld [vmem:[#allocation5 + $0x10] sm:$0xff]
    %v69 = vld [vmem:[#allocation5 + $0x18] sm:$0xff]
    %v70 = vld [vmem:[#allocation5 + $0x20] sm:$0xff]
    %v71 = vld [vmem:[#allocation5 + $0x28] sm:$0xff]
    %v72 = vld [vmem:[#allocation5 + $0x30] sm:$0xff]
    %v73 = vld [vmem:[#allocation5 + $0x38] sm:$0xff]
    %v74 = vld [vmem:[#allocation5 + $0x40] sm:$0xff]
    %v75 = vld [vmem:[#allocation5 + $0x48] sm:$0xff]
    %v76 = vld [vmem:[#allocation5 + $0x50] sm:$0xff]
    %v77 = vld [vmem:[#allocation5 + $0x58] sm:$0xff]
    %v78 = vld [vmem:[#allocation5 + $0x60] sm:$0xff]
    %v79 = vld [vmem:[#allocation5 + $0x68] sm:$0xff]
    %v80 = vld [vmem:[#allocation5 + $0x70] sm:$0xff]
    %v81 = vld [vmem:[#allocation5 + $0x78] sm:$0xff]
    %82 = vmatprep.subr.mxu0 0.0
    %83 = vmatpush1.msra.mxu0 %v66
    %84 = vmatprep.subr.mxu0 0.0
    %85 = vmatpush1.msra.mxu0 %v67
    %86 = vmatprep.subr.mxu0 0.0
    %87 = vmatpush1.msra.mxu0 %v68
    %88 = vmatprep.subr.mxu0 0.0
    %89 = vmatpush1.msra.mxu0 %v69
    %90 = vmatprep.subr.mxu0 0.0
    %91 = vmatpush1.msra.mxu0 %v70
    %92 = vmatprep.subr.mxu0 0.0
    %93 = vmatpush1.msra.mxu0 %v71
    %94 = vmatprep.subr.mxu0 0.0
    %95 = vmatpush1.msra.mxu0 %v72
    %96 = vmatprep.subr.mxu0 0.0
    %97 = vmatpush1.msra.mxu0 %v73
    %98 = vmatprep.subr.mxu0 0.0
    %99 = vmatpush1.msra.mxu0 %v74
    %100 = vmatprep.subr.mxu0 0.0
    %101 = vmatpush1.msra.mxu0 %v75
    %102 = vmatprep.subr.mxu0 0.0
    %103 = vmatpush1.msra.mxu0 %v76
    %104 = vmatprep.subr.mxu0 0.0
    %105 = vmatpush1.msra.mxu0 %v77
    %106 = vmatprep.subr.mxu0 0.0
    %107 = vmatpush1.msra.mxu0 %v78
    %108 = vmatprep.subr.mxu0 0.0
    %109 = vmatpush1.msra.mxu0 %v79
    %110 = vmatprep.subr.mxu0 0.0
    %111 = vmatpush1.msra.mxu0 %v80
    %112 = vmatprep.subr.mxu0 0.0
    %113 = vmatpush1.msra.mxu0 %v81
    %114 = vmatprep.subr.mxu0 0.0
    %115 = vmatpush1.msra.mxu0 0.0
    %116 = vmatprep.subr.mxu0 0.0
    %117 = vmatpush1.msra.mxu0 0.0
    %118 = vmatprep.subr.mxu0 0.0
    %119 = vmatpush1.msra.mxu0 0.0
    %120 = vmatprep.subr.mxu0 0.0
    %121 = vmatpush1.msra.mxu0 0.0
    %122 = vmatprep.subr.mxu0 0.0
    %123 = vmatpush1.msra.mxu0 0.0
    %124 = vmatprep.subr.mxu0 0.0
    %125 = vmatpush1.msra.mxu0 0.0
    %126 = vmatprep.subr.mxu0 0.0
    %127 = vmatpush1.msra.mxu0 0.0
    %128 = vmatprep.subr.mxu0 0.0
    %129 = vmatpush1.msra.mxu0 0.0
    %130 = vmatprep.subr.mxu0 0.0
    %131 = vmatpush1.msra.mxu0 0.0
    %132 = vmatprep.subr.mxu0 0.0
    %133 = vmatpush1.msra.mxu0 0.0
    %134 = vmatprep.subr.mxu0 0.0
    %135 = vmatpush1.msra.mxu0 0.0
    %136 = vmatprep.subr.mxu0 0.0
    %137 = vmatpush1.msra.mxu0 0.0
    %138 = vmatprep.subr.mxu0 0.0
    %139 = vmatpush1.msra.mxu0 0.0
    %140 = vmatprep.subr.mxu0 0.0
    %141 = vmatpush1.msra.mxu0 0.0
    %142 = vmatprep.subr.mxu0 0.0
    %143 = vmatpush1.msra.mxu0 0.0
    %144 = vmatprep.subr.mxu0 0.0
    %145 = vmatpush1.msra.mxu0 0.0
    %146 = vmatprep.mubr.f32.mxu0 0.0
    %147 = vmatmul.mubr.f32.gmra.mrb[0].mxu0 %v65
    %v148 = vpop.f32.mrb[0].mxu0
    %v149 = vadd.f32 0.0, %v148
    %v150 = vpop.f32.mrb[0].mxu0
    %151 = vdwg.mxu0
    %v152 = vadd.f32 %v64, %v149
    %153 = vst [vmem:[#allocation8] sm:$0xff] %v152
    // Predicated region
    $region30: #{tpu_custom_call.1} parent=1 // pred_check
      _
    $region31: #{tpu_custom_call.1} parent=1 // pred_check_branch
      %155 = sbr.rel (0) target = $region33
    $region32: #{tpu_custom_call.1} parent=1 // pred_region
      %s157 = ssub.s32 128, 128
      %158 = vsyncadd [#allocation4], %s157
      %s160 = sshll.u32 [#allocation8], 4
      %s161 = int_to_ptr.vmem [resolvable:$true] %s160
      %163 = dma.vmem_to_hbm [thread:$0]  %s161, 128, %s3, [#allocation4]
    $region33: #{tpu_custom_call.1} parent=1 // pred_fallthru
      _
    // Predicated region
    $region34: #{tpu_custom_call.1} parent=1 // pred_check
      _
    $region35: #{tpu_custom_call.1} parent=1 // pred_check_branch
      %165 = sbr.rel (0) target = $region37
    $region36: #{tpu_custom_call.1} parent=1 // pred_region
      %166 = dma.done [#allocation4], 128
    $region37: #{tpu_custom_call.1} parent=1 // pred_fallthru
      _
    %167 = vsyncpa [#allocation3], 1
    %168 = vsyncpa [#allocation6], 1
    %169 = vsyncpa [#allocation4], 1

</llo_original>
